<compile_context>
chip_gen: v6e
topology: v6e:2x2x1
jax: 0.10.0
libtpu: 0.0.40
codegen_flags: <defaults>
</compile_context>

<pallas_src>
import functools

import jax
import jax.numpy as jnp
import numpy as np
from jax.experimental import pallas as pl
from jax.experimental.pallas import tpu as pltpu

_PACK = 4  # batch rows packed per slab row (H=32 -> _PACK*H = 128 lanes)


def _round_up(x: int, m: int) -> int:
    return ((x + m - 1) // m) * m


def _cdiv(a: int, b: int) -> int:
    return -(-a // b)


def _gru_slab_kernel(x_ref, h0_ref, w_ref, b_ref, out_ref, *, hidden: int):
    """One batch tile; each slab row holds _PACK consecutive batch rows.

    x_ref  : [TS, PACK*K]    bf16  (K = dim_act + dim_obs + H per batch row)
    h0_ref : [TS, PACK*H]    f32
    w_ref  : [PACK*K, PACK*4H] bf16  block-diagonal packed GRU weights
    b_ref  : [1, PACK*4H]    f32   packed bias, tiled PACK times
    out_ref: [TS, PACK*H]    f32
    """
    h = hidden
    # Single MXU matmul (bf16 in, f32 accumulate): all of gi and gh for the
    # PACK packed batch rows in one push sequence.
    g = jnp.dot(x_ref[...], w_ref[...], preferred_element_type=jnp.float32)
    g = g + b_ref[...]
    h0 = h0_ref[...]

    outs = []
    for j in range(_PACK):                          # static unroll
        gj = g[:, 4 * h * j:4 * h * (j + 1)]        # [TS, 4H]: r | z | n_x | n_h
        rz = jax.nn.sigmoid(gj[:, :2 * h])          # one sigmoid for r and z
        r, z = rz[:, :h], rz[:, h:]
        n = jnp.tanh(gj[:, 2 * h:3 * h] + r * gj[:, 3 * h:4 * h])
        h0j = h0[:, h * j:h * (j + 1)]
        outs.append(n + z * (h0j - n))              # == (1-z)*n + z*h0
    # One unmasked 128-lane block store (lane-dense output).
    out_ref[...] = jnp.concatenate(outs, axis=-1).astype(out_ref.dtype)


def _choose_tiling(n: int, cap_rows: int = 2048, min_split_rows: int = 512):
    """Pick (tile_rows, padded_rows); both multiples of _PACK*8 = 32."""
    n_pad = _round_up(max(n, 1), _PACK * 8)
    if n_pad < min_split_rows:
        return n_pad, n_pad                         # tiny batch: single tile
    # >= 2 grid steps so v7x's two TensorCores both get work.
    num_tiles = max(2, _cdiv(n_pad, cap_rows))
    tb = _round_up(_cdiv(n_pad, num_tiles), _PACK * 8)
    return tb, _round_up(n_pad, tb)


def gru_cell_pallas(x_bf16, h0r, params):
    """x_bf16: [N, K] bf16 (= [a | o | h0]); h0r: [N, H] f32 -> h1r [N, H]."""
    n, k = x_bf16.shape
    hdim = h0r.shape[-1]
    tb, n_pad = _choose_tiling(n)
    if n_pad != n:
        # TODO(synk): a masked tail tile (grid=cdiv + row-iota mask) would
        # avoid this pad copy for large batches not divisible by the tile.
        pad = ((0, n_pad - n), (0, 0))
        x_bf16 = jnp.pad(x_bf16, pad)
        h0r = jnp.pad(h0r, pad)

    ts = tb // _PACK                                # slab rows per tile
    n_slab = n_pad // _PACK
    # Free row-major reshapes into the lane-dense slab layout.
    x_slab = x_bf16.reshape(n_slab, _PACK * k)
    h0_slab = h0r.reshape(n_slab, _PACK * hdim)
    w_bd = params["w_bd"]
    b_slab = params["b_slab"]

    out = pl.pallas_call(
        functools.partial(_gru_slab_kernel, hidden=hdim),
        out_shape=jax.ShapeDtypeStruct((n_slab, _PACK * hdim), jnp.float32),
        grid_spec=pltpu.PrefetchScalarGridSpec(
            num_scalar_prefetch=0,
            grid=(n_slab // ts,),
            in_specs=[
                pl.BlockSpec((ts, _PACK * k), lambda i: (i, 0)),
                pl.BlockSpec((ts, _PACK * hdim), lambda i: (i, 0)),
                pl.BlockSpec(w_bd.shape, lambda i: (0, 0)),     # resident
                pl.BlockSpec(b_slab.shape, lambda i: (0, 0)),   # resident
            ],
            out_specs=pl.BlockSpec((ts, _PACK * hdim), lambda i: (i, 0)),
        ),
        compiler_params=pltpu.CompilerParams(
            dimension_semantics=("parallel",),
            vmem_limit_bytes=32 * 1024 * 1024,   # usage is ~2 MiB/tile; explicit per review
        ),
    )(x_slab, h0_slab, w_bd, b_slab)

    h1r = out.reshape(n_pad, hdim)
    return h1r[:n] if n_pad != n else h1r


def pack_gru_params(w_ih, w_hh, b_ih, b_hh):
    """Pack torch.nn.GRUCell params into the block-diagonal slab layout."""
    hdim = w_hh.shape[-1]

    def cols(w, g):                 # gate g of a [3H, d] weight, transposed
        return w[g * hdim:(g + 1) * hdim].T

    z_in = jnp.zeros((w_ih.shape[-1], hdim), w_ih.dtype)
    z_hh = jnp.zeros((hdim, hdim), w_hh.dtype)
    # Per-row packed projection: rows = [input features (a,o) ; h0], columns =
    # [r | z | n_x | n_h].  n_x only sees the input, n_h only sees h0, so
    # torch's n = tanh(gi_n + b_in + r*(gh_n + b_hn)) is reproduced exactly.
    w_row = jnp.concatenate([
        jnp.concatenate([cols(w_ih, 0), cols(w_ih, 1), cols(w_ih, 2), z_in], -1),
        jnp.concatenate([cols(w_hh, 0), cols(w_hh, 1), z_hh, cols(w_hh, 2)], -1),
    ], axis=0)                                      # [K, 4H]
    # Block-diagonal replication so _PACK batch rows share one slab row.
    w_bd = jnp.kron(jnp.eye(_PACK, dtype=w_row.dtype), w_row).astype(jnp.bfloat16)
    # Packed f32 bias: fused r/z bias, split n biases (b_ih_n | b_hh_n).
    b = jnp.concatenate([
        b_ih[0:hdim] + b_hh[0:hdim],
        b_ih[hdim:2 * hdim] + b_hh[hdim:2 * hdim],
        b_ih[2 * hdim:3 * hdim],
        b_hh[2 * hdim:3 * hdim],
    ]).reshape(1, 4 * hdim).astype(jnp.float32)
    b_slab = jnp.tile(b, (1, _PACK))
    return {
        "w_bd": w_bd, "b_slab": b_slab,
        # raw f32 copies kept only for the pure-JAX reference checks
        "w_ih": w_ih, "w_hh": w_hh, "b_ih": b_ih, "b_hh": b_hh,
    }


def init_gru_params(key, dim_act, dim_obs, dim_out):
    """Same shapes / init law as torch.nn.GRUCell(dim_act+dim_obs, dim_out)."""
    dim_in = dim_act + dim_obs
    k = 1.0 / np.sqrt(dim_out)
    k0, k1, k2, k3 = jax.random.split(key, 4)
    w_ih = jax.random.uniform(k0, (3 * dim_out, dim_in), jnp.float32, -k, k)
    w_hh = jax.random.uniform(k1, (3 * dim_out, dim_out), jnp.float32, -k, k)
    b_ih = jax.random.uniform(k2, (3 * dim_out,), jnp.float32, -k, k)
    b_hh = jax.random.uniform(k3, (3 * dim_out,), jnp.float32, -k, k)
    return pack_gru_params(w_ih, w_hh, b_ih, b_hh)


def gru_agg_forward(h0, a, o, params, dim_act):
    """Mirror of GRUAggNet.forward (the `ao` concat stays fused into one op)."""
    hdim = h0.shape[-1]
    h0r = h0.reshape(-1, hdim).astype(jnp.float32)
    parts = []
    if a is not None and dim_act > 0:
        if not jnp.issubdtype(a.dtype, jnp.floating):
            # TODO(synk): discrete actions could instead row-gather the packed
            # action weights; kept as one-hot so it folds into the single
            # merged MXU op (one-hot columns are nearly free there).
            a = jax.nn.one_hot(a.astype(jnp.int32), dim_act, dtype=jnp.float32)
        parts.append(a.reshape(-1, a.shape[-1]))
    parts.append(o.reshape(-1, o.shape[-1]))
    parts.append(h0r)
    # One concat in the wrapper; bf16 cast here (halves activation HBM reads).
    x = jnp.concatenate(parts, axis=-1).astype(jnp.bfloat16)
    h1r = gru_cell_pallas(x, h0r, params)
    return h1r.reshape(h0.shape)


def _gru_reference(aor, h0r, params, *, emulate_bf16=False):
    """Pure-JAX torch.nn.GRUCell reference (optionally emulating bf16 MXU)."""
    w_ih_t = params["w_ih"].T
    w_hh_t = params["w_hh"].T
    if emulate_bf16:
        gi = jnp.dot(aor.astype(jnp.bfloat16), w_ih_t.astype(jnp.bfloat16),
                     preferred_element_type=jnp.float32) + params["b_ih"]
        gh = jnp.dot(h0r.astype(jnp.bfloat16), w_hh_t.astype(jnp.bfloat16),
                     preferred_element_type=jnp.float32) + params["b_hh"]
    else:
        gi = aor @ w_ih_t + params["b_ih"]
        gh = h0r @ w_hh_t + params["b_hh"]
    h = h0r.shape[-1]
    r = jax.nn.sigmoid(gi[:, :h] + gh[:, :h])
    z = jax.nn.sigmoid(gi[:, h:2 * h] + gh[:, h:2 * h])
    n = jnp.tanh(gi[:, 2 * h:] + r * gh[:, 2 * h:])
    return (1.0 - z) * n + z * h0r


if __name__ == "__main__":
    # Config: dim_obs=(16,), dim_act=4, dim_out=32; batch shape (2, 4).
    dim_obs, dim_act, dim_out = 16, 4, 32
    batch_shape = (2, 4)

    key = jax.random.PRNGKey(0)
    kp, ka, ko, kh = jax.random.split(key, 4)

    params = init_gru_params(kp, dim_act, dim_obs, dim_out)

    a = jax.random.normal(ka, batch_shape + (dim_act,), jnp.float32)
    o = jax.random.normal(ko, batch_shape + (dim_obs,), jnp.float32)
    # non-zero hidden state so the z*h0 blend path is exercised
    h0 = 0.1 * jax.random.normal(kh, batch_shape + (dim_out,), jnp.float32)

    # References (pure JAX, torch.nn.GRUCell math).
    aor = jnp.concatenate([a, o], axis=-1).reshape(-1, dim_act + dim_obs)
    h0r = h0.reshape(-1, dim_out)
    ref_f32 = _gru_reference(aor, h0r, params).reshape(h0.shape)
    ref_bf16 = _gru_reference(aor, h0r, params,
                              emulate_bf16=True).reshape(h0.shape)

    fwd = jax.jit(gru_agg_forward, static_argnames=("dim_act",))
    h1 = fwd(h0, a, o, params, dim_act=dim_act)
    h1 = jax.block_until_ready(h1)
    assert h1.shape == h0.shape

    # Tight check vs a reference that emulates the bf16 MXU inputs.
    np.testing.assert_allclose(np.asarray(h1), np.asarray(ref_bf16),
                               rtol=2e-3, atol=2e-4)
    # Semantic check vs the full-f32 torch.nn.GRUCell math (bf16 weights /
    # activations move results at the ~1e-2 level).
    np.testing.assert_allclose(np.asarray(h1), np.asarray(ref_f32),
                               rtol=2e-2, atol=2e-2)

    print("KERNEL_OK")
</pallas_src>

<mosaic_0001>
module attributes {stable_mosaic.version = 11 : i64} {
  func.func @_gru_slab_kernel(%arg0: i32, %arg1: memref<8x208xbf16, #tpu.memory_space<vmem>>, %arg2: memref<8x128xf32, #tpu.memory_space<vmem>>, %arg3: memref<208x512xbf16, #tpu.memory_space<vmem>>, %arg4: memref<1x512xf32, #tpu.memory_space<vmem>>, %arg5: memref<8x128xf32, #tpu.memory_space<vmem>>) attributes {dimension_semantics = [#tpu.dimension_semantics<parallel>], iteration_bounds = array<i64: 1>, scalar_prefetch = 0 : i64, scratch_operands = 0 : i64, tpu.core_type = #tpu.core_type<tc>, window_params = [{transform_indices = @transform_0, window_bounds = array<i64: 8, 208>}, {transform_indices = @transform_1, window_bounds = array<i64: 8, 128>}, {pipeline_mode = #tpu.pipeline_mode<synchronous>, transform_indices = @transform_2, window_bounds = array<i64: 208, 512>}, {pipeline_mode = #tpu.pipeline_mode<synchronous>, transform_indices = @transform_3, window_bounds = array<i64: 1, 512>}, {transform_indices = @transform_4, window_bounds = array<i64: 8, 128>}]} {
    %c0 = arith.constant 0 : index
    %c0_0 = arith.constant 0 : index
    %0 = vector.load %arg1[%c0, %c0_0] : memref<8x208xbf16, #tpu.memory_space<vmem>>, vector<8x208xbf16>
    %c0_1 = arith.constant 0 : index
    %c0_2 = arith.constant 0 : index
    %1 = vector.load %arg3[%c0_1, %c0_2] : memref<208x512xbf16, #tpu.memory_space<vmem>>, vector<208x512xbf16>
    %cst = arith.constant dense<0.000000e+00> : vector<8x512xf32>
    %2 = tpu.matmul %0, %1, %cst {dimension_numbers = #tpu.dot_dimension_numbers<[1], [0], [0], [1], [0, 0, 1, 1], [], []>} : vector<8x208xbf16>, vector<208x512xbf16>, vector<8x512xf32> -> vector<8x512xf32>
    %c0_3 = arith.constant 0 : index
    %c0_4 = arith.constant 0 : index
    %3 = vector.load %arg4[%c0_3, %c0_4] : memref<1x512xf32, #tpu.memory_space<vmem>>, vector<1x512xf32>
    %4 = vector.broadcast %3 : vector<1x512xf32> to vector<8x512xf32>
    %5 = arith.addf %2, %4 : vector<8x512xf32>
    %c0_5 = arith.constant 0 : index
    %c0_6 = arith.constant 0 : index
    %6 = vector.load %arg2[%c0_5, %c0_6] : memref<8x128xf32, #tpu.memory_space<vmem>>, vector<8x128xf32>
    %7 = vector.extract_strided_slice %5 {offsets = [0, 0], sizes = [8, 128], strides = [1, 1]} : vector<8x512xf32> to vector<8x128xf32>
    %8 = vector.extract_strided_slice %7 {offsets = [0, 0], sizes = [8, 64], strides = [1, 1]} : vector<8x128xf32> to vector<8x64xf32>
    %9 = arith.negf %8 : vector<8x64xf32>
    %10 = math.exp %9 : vector<8x64xf32>
    %cst_7 = arith.constant 1.000000e+00 : f32
    %11 = vector.broadcast %cst_7 : f32 to vector<8x64xf32>
    %12 = arith.addf %11, %10 : vector<8x64xf32>
    %13 = arith.divf %11, %12 : vector<8x64xf32>
    %14 = vector.extract_strided_slice %13 {offsets = [0, 0], sizes = [8, 32], strides = [1, 1]} : vector<8x64xf32> to vector<8x32xf32>
    %15 = vector.extract_strided_slice %13 {offsets = [0, 32], sizes = [8, 32], strides = [1, 1]} : vector<8x64xf32> to vector<8x32xf32>
    %16 = vector.extract_strided_slice %7 {offsets = [0, 64], sizes = [8, 32], strides = [1, 1]} : vector<8x128xf32> to vector<8x32xf32>
    %17 = vector.extract_strided_slice %7 {offsets = [0, 96], sizes = [8, 32], strides = [1, 1]} : vector<8x128xf32> to vector<8x32xf32>
    %18 = arith.mulf %14, %17 : vector<8x32xf32>
    %19 = arith.addf %16, %18 : vector<8x32xf32>
    %20 = math.tanh %19 : vector<8x32xf32>
    %21 = vector.extract_strided_slice %6 {offsets = [0, 0], sizes = [8, 32], strides = [1, 1]} : vector<8x128xf32> to vector<8x32xf32>
    %22 = arith.subf %21, %20 : vector<8x32xf32>
    %23 = arith.mulf %15, %22 : vector<8x32xf32>
    %24 = arith.addf %20, %23 : vector<8x32xf32>
    %25 = vector.extract_strided_slice %5 {offsets = [0, 128], sizes = [8, 128], strides = [1, 1]} : vector<8x512xf32> to vector<8x128xf32>
    %26 = vector.extract_strided_slice %25 {offsets = [0, 0], sizes = [8, 64], strides = [1, 1]} : vector<8x128xf32> to vector<8x64xf32>
    %27 = arith.negf %26 : vector<8x64xf32>
    %28 = math.exp %27 : vector<8x64xf32>
    %cst_8 = arith.constant 1.000000e+00 : f32
    %29 = vector.broadcast %cst_8 : f32 to vector<8x64xf32>
    %30 = arith.addf %29, %28 : vector<8x64xf32>
    %31 = arith.divf %29, %30 : vector<8x64xf32>
    %32 = vector.extract_strided_slice %31 {offsets = [0, 0], sizes = [8, 32], strides = [1, 1]} : vector<8x64xf32> to vector<8x32xf32>
    %33 = vector.extract_strided_slice %31 {offsets = [0, 32], sizes = [8, 32], strides = [1, 1]} : vector<8x64xf32> to vector<8x32xf32>
    %34 = vector.extract_strided_slice %25 {offsets = [0, 64], sizes = [8, 32], strides = [1, 1]} : vector<8x128xf32> to vector<8x32xf32>
    %35 = vector.extract_strided_slice %25 {offsets = [0, 96], sizes = [8, 32], strides = [1, 1]} : vector<8x128xf32> to vector<8x32xf32>
    %36 = arith.mulf %32, %35 : vector<8x32xf32>
    %37 = arith.addf %34, %36 : vector<8x32xf32>
    %38 = math.tanh %37 : vector<8x32xf32>
    %39 = vector.extract_strided_slice %6 {offsets = [0, 32], sizes = [8, 32], strides = [1, 1]} : vector<8x128xf32> to vector<8x32xf32>
    %40 = arith.subf %39, %38 : vector<8x32xf32>
    %41 = arith.mulf %33, %40 : vector<8x32xf32>
    %42 = arith.addf %38, %41 : vector<8x32xf32>
    %43 = vector.extract_strided_slice %5 {offsets = [0, 256], sizes = [8, 128], strides = [1, 1]} : vector<8x512xf32> to vector<8x128xf32>
    %44 = vector.extract_strided_slice %43 {offsets = [0, 0], sizes = [8, 64], strides = [1, 1]} : vector<8x128xf32> to vector<8x64xf32>
    %45 = arith.negf %44 : vector<8x64xf32>
    %46 = math.exp %45 : vector<8x64xf32>
    %cst_9 = arith.constant 1.000000e+00 : f32
    %47 = vector.broadcast %cst_9 : f32 to vector<8x64xf32>
    %48 = arith.addf %47, %46 : vector<8x64xf32>
    %49 = arith.divf %47, %48 : vector<8x64xf32>
    %50 = vector.extract_strided_slice %49 {offsets = [0, 0], sizes = [8, 32], strides = [1, 1]} : vector<8x64xf32> to vector<8x32xf32>
    %51 = vector.extract_strided_slice %49 {offsets = [0, 32], sizes = [8, 32], strides = [1, 1]} : vector<8x64xf32> to vector<8x32xf32>
    %52 = vector.extract_strided_slice %43 {offsets = [0, 64], sizes = [8, 32], strides = [1, 1]} : vector<8x128xf32> to vector<8x32xf32>
    %53 = vector.extract_strided_slice %43 {offsets = [0, 96], sizes = [8, 32], strides = [1, 1]} : vector<8x128xf32> to vector<8x32xf32>
    %54 = arith.mulf %50, %53 : vector<8x32xf32>
    %55 = arith.addf %52, %54 : vector<8x32xf32>
    %56 = math.tanh %55 : vector<8x32xf32>
    %57 = vector.extract_strided_slice %6 {offsets = [0, 64], sizes = [8, 32], strides = [1, 1]} : vector<8x128xf32> to vector<8x32xf32>
    %58 = arith.subf %57, %56 : vector<8x32xf32>
    %59 = arith.mulf %51, %58 : vector<8x32xf32>
    %60 = arith.addf %56, %59 : vector<8x32xf32>
    %61 = vector.extract_strided_slice %5 {offsets = [0, 384], sizes = [8, 128], strides = [1, 1]} : vector<8x512xf32> to vector<8x128xf32>
    %62 = vector.extract_strided_slice %61 {offsets = [0, 0], sizes = [8, 64], strides = [1, 1]} : vector<8x128xf32> to vector<8x64xf32>
    %63 = arith.negf %62 : vector<8x64xf32>
    %64 = math.exp %63 : vector<8x64xf32>
    %cst_10 = arith.constant 1.000000e+00 : f32
    %65 = vector.broadcast %cst_10 : f32 to vector<8x64xf32>
    %66 = arith.addf %65, %64 : vector<8x64xf32>
    %67 = arith.divf %65, %66 : vector<8x64xf32>
    %68 = vector.extract_strided_slice %67 {offsets = [0, 0], sizes = [8, 32], strides = [1, 1]} : vector<8x64xf32> to vector<8x32xf32>
    %69 = vector.extract_strided_slice %67 {offsets = [0, 32], sizes = [8, 32], strides = [1, 1]} : vector<8x64xf32> to vector<8x32xf32>
    %70 = vector.extract_strided_slice %61 {offsets = [0, 64], sizes = [8, 32], strides = [1, 1]} : vector<8x128xf32> to vector<8x32xf32>
    %71 = vector.extract_strided_slice %61 {offsets = [0, 96], sizes = [8, 32], strides = [1, 1]} : vector<8x128xf32> to vector<8x32xf32>
    %72 = arith.mulf %68, %71 : vector<8x32xf32>
    %73 = arith.addf %70, %72 : vector<8x32xf32>
    %74 = math.tanh %73 : vector<8x32xf32>
    %75 = vector.extract_strided_slice %6 {offsets = [0, 96], sizes = [8, 32], strides = [1, 1]} : vector<8x128xf32> to vector<8x32xf32>
    %76 = arith.subf %75, %74 : vector<8x32xf32>
    %77 = arith.mulf %69, %76 : vector<8x32xf32>
    %78 = arith.addf %74, %77 : vector<8x32xf32>
    %79 = tpu.concatenate %24, %42, %60, %78 in 1 : vector<8x32xf32>, vector<8x32xf32>, vector<8x32xf32>, vector<8x32xf32> -> vector<8x128xf32>
    %c0_11 = arith.constant 0 : index
    %c0_12 = arith.constant 0 : index
    %80 = vector.load %arg5[%c0_11, %c0_12] : memref<8x128xf32, #tpu.memory_space<vmem>>, vector<8x128xf32>
    tpu.vector_store %arg5[%c0_11, %c0_12], %79 {strides = array<i32>} : memref<8x128xf32, #tpu.memory_space<vmem>>, vector<8x128xf32>,
    return
  }
  func.func @transform_0(%arg0: i32) -> (i32, i32) {
    %c0_i32 = arith.constant 0 : i32
    %c0_i32_0 = arith.constant 0 : i32
    return %arg0, %c0_i32 : i32, i32
  }
  func.func @transform_1(%arg0: i32) -> (i32, i32) {
    %c0_i32 = arith.constant 0 : i32
    %c0_i32_0 = arith.constant 0 : i32
    return %arg0, %c0_i32 : i32, i32
  }
  func.func @transform_2(%arg0: i32) -> (i32, i32) {
    %c0_i32 = arith.constant 0 : i32
    %c0_i32_0 = arith.constant 0 : i32
    %c0_i32_1 = arith.constant 0 : i32
    return %c0_i32, %c0_i32_0 : i32, i32
  }
  func.func @transform_3(%arg0: i32) -> (i32, i32) {
    %c0_i32 = arith.constant 0 : i32
    %c0_i32_0 = arith.constant 0 : i32
    %c0_i32_1 = arith.constant 0 : i32
    return %c0_i32, %c0_i32_0 : i32, i32
  }
  func.func @transform_4(%arg0: i32) -> (i32, i32) {
    %c0_i32 = arith.constant 0 : i32
    %c0_i32_0 = arith.constant 0 : i32
    return %arg0, %c0_i32 : i32, i32
  }
}

</mosaic_0001>

<llo_original>
// kernel: gru_agg_forward.1
$region0: #{gru_agg_forward.1}
  #allocation0 [shape = 'u32[]', space=smem, size = 0x4, offset = 0x4, fixed_abs, tag = 'smem constant byte address 0x4 - core index']
  #allocation1 [shape = 'u32[144,128]{1,0:T(1,128)}', space=vmem, size = 0x12000, scoped, tag = 'internal scratch']
  %s0 = inlined_call_operand.vmem [shape: bf16[8,208], index: 0, kind: input, shape index: {}]
  %s1 = inlined_call_operand.vmem [shape: f32[8,128], index: 1, kind: input, shape index: {}]
  %s2 = inlined_call_operand.hbm [shape: bf16[208,512], index: 2, kind: input, shape index: {}]
  %s3 = inlined_call_operand.vmem [shape: f32[1,512], index: 3, kind: input, shape index: {}]
  %s4 = inlined_call_operand.vmem [shape: f32[8,128], index: 4, kind: output, shape index: {}]
  %s5 = sld [smem:[#allocation0]]
  $region30: #{gru_agg_forward.1} parent=0
    _
  %s7 = ssub.s32 1, %s5
  %s8 = scalar_select 0, %s7, %s5
  $region1: #{gru_agg_forward.1} parent=0
    #allocation2 [shape = 'u8[212992]{0}', space=vmem, size = 0x34000, scoped, tag = 'input window, operand 2, single buffered']
    #allocation3 [shape = 's32[1]{0}', space=sflag, size = 0x4, scoped, tag = 'scoped memory for gru_agg_forward.1']
    %9 = vsyncpa [#allocation3], 0
    // Predicated region
    $region2: #{gru_agg_forward.1} parent=1 // pred_check
      _
    $region3: #{gru_agg_forward.1} parent=1 // pred_check_branch
      %11 = sbr.rel (0) target = $region5
    $region4: #{gru_agg_forward.1} parent=1 // pred_region
      _
    $region5: #{gru_agg_forward.1} parent=1 // pred_fallthru
      _
    // Predicated region
    $region6: #{gru_agg_forward.1} parent=1 // pred_check
      _
    $region7: #{gru_agg_forward.1} parent=1 // pred_check_branch
      %13 = sbr.rel (0) target = $region9
    $region8: #{gru_agg_forward.1} parent=1 // pred_region
      _
    $region9: #{gru_agg_forward.1} parent=1 // pred_fallthru
      _
    // Predicated region
    $region10: #{gru_agg_forward.1} parent=1 // pred_check
      _
    $region11: #{gru_agg_forward.1} parent=1 // pred_check_branch
      %15 = sbr.rel (0) target = $region13
    $region12: #{gru_agg_forward.1} parent=1 // pred_region
      %s17 = ssub.s32 6656, 6656
      %18 = vsyncadd [#allocation3], %s17
      %s19 = sshll.u32 [#allocation2], 4
      %s20 = int_to_ptr.vmem [resolvable:$true] %s19
      %25 = dma.hbm_to_vmem [thread:$0]  %s2, 6656, %s20, [#allocation3], 256, 256, 16
    $region13: #{gru_agg_forward.1} parent=1 // pred_fallthru
      _
    // Predicated region
    $region14: #{gru_agg_forward.1} parent=1 // pred_check
      _
    $region15: #{gru_agg_forward.1} parent=1 // pred_check_branch
      %27 = sbr.rel (0) target = $region17
    $region16: #{gru_agg_forward.1} parent=1 // pred_region
      _
    $region17: #{gru_agg_forward.1} parent=1 // pred_fallthru
      _
    // Predicated region
    $region18: #{gru_agg_forward.1} parent=1 // pred_check
      _
    $region19: #{gru_agg_forward.1} parent=1 // pred_check_branch
      %29 = sbr.rel (0) target = $region21
    $region20: #{gru_agg_forward.1} parent=1 // pred_region
      %30 = dma.done [#allocation3], 6656
    $region21: #{gru_agg_forward.1} parent=1 // pred_fallthru
      _
    %v32 = vld [vmem:[%s0] sm:$0xff]
    %v33 = vld [vmem:[#allocation2] sm:$0xff]
    %v34 = vld [vmem:[#allocation2 + $0x8] sm:$0xff]
    %v35 = vld [vmem:[#allocation2 + $0x10] sm:$0xff]
    %v36 = vld [vmem:[#allocation2 + $0x18] sm:$0xff]
    %v37 = vld [vmem:[#allocation2 + $0x20] sm:$0xff]
    %v38 = vld [vmem:[#allocation2 + $0x28] sm:$0xff]
    %v39 = vld [vmem:[#allocation2 + $0x30] sm:$0xff]
    %v40 = vld [vmem:[#allocation2 + $0x38] sm:$0xff]
    %v41 = vld [vmem:[#allocation2 + $0x40] sm:$0xff]
    %v42 = vld [vmem:[#allocation2 + $0x48] sm:$0xff]
    %v43 = vld [vmem:[#allocation2 + $0x50] sm:$0xff]
    %v44 = vld [vmem:[#allocation2 + $0x58] sm:$0xff]
    %v45 = vld [vmem:[#allocation2 + $0x60] sm:$0xff]
    %v46 = vld [vmem:[#allocation2 + $0x68] sm:$0xff]
    %v47 = vld [vmem:[#allocation2 + $0x70] sm:$0xff]
    %v48 = vld [vmem:[#allocation2 + $0x78] sm:$0xff]
    %v49 = vld [vmem:[#allocation2 + $0x80] sm:$0xff]
    %v50 = vld [vmem:[#allocation2 + $0x88] sm:$0xff]
    %v51 = vld [vmem:[#allocation2 + $0x90] sm:$0xff]
    %v52 = vld [vmem:[#allocation2 + $0x98] sm:$0xff]
    %v53 = vld [vmem:[#allocation2 + $0xa0] sm:$0xff]
    %v54 = vld [vmem:[#allocation2 + $0xa8] sm:$0xff]
    %v55 = vld [vmem:[#allocation2 + $0xb0] sm:$0xff]
    %v56 = vld [vmem:[#allocation2 + $0xb8] sm:$0xff]
    %v57 = vld [vmem:[#allocation2 + $0xc0] sm:$0xff]
    %v58 = vld [vmem:[#allocation2 + $0xc8] sm:$0xff]
    %v59 = vld [vmem:[#allocation2 + $0xd0] sm:$0xff]
    %v60 = vld [vmem:[#allocation2 + $0xd8] sm:$0xff]
    %v61 = vld [vmem:[#allocation2 + $0xe0] sm:$0xff]
    %v62 = vld [vmem:[#allocation2 + $0xe8] sm:$0xff]
    %v63 = vld [vmem:[#allocation2 + $0xf0] sm:$0xff]
    %v64 = vld [vmem:[#allocation2 + $0xf8] sm:$0xff]
    %v65 = vld [vmem:[#allocation2 + $0x100] sm:$0xff]
    %v66 = vld [vmem:[#allocation2 + $0x108] sm:$0xff]
    %v67 = vld [vmem:[#allocation2 + $0x110] sm:$0xff]
    %v68 = vld [vmem:[#allocation2 + $0x118] sm:$0xff]
    %v69 = vld [vmem:[#allocation2 + $0x120] sm:$0xff]
    %v70 = vld [vmem:[#allocation2 + $0x128] sm:$0xff]
    %v71 = vld [vmem:[#allocation2 + $0x130] sm:$0xff]
    %v72 = vld [vmem:[#allocation2 + $0x138] sm:$0xff]
    %v73 = vld [vmem:[#allocation2 + $0x140] sm:$0xff]
    %v74 = vld [vmem:[#allocation2 + $0x148] sm:$0xff]
    %v75 = vld [vmem:[#allocation2 + $0x150] sm:$0xff]
    %v76 = vld [vmem:[#allocation2 + $0x158] sm:$0xff]
    %v77 = vld [vmem:[#allocation2 + $0x160] sm:$0xff]
    %v78 = vld [vmem:[#allocation2 + $0x168] sm:$0xff]
    %v79 = vld [vmem:[#allocation2 + $0x170] sm:$0xff]
    %v80 = vld [vmem:[#allocation2 + $0x178] sm:$0xff]
    %v81 = vld [vmem:[#allocation2 + $0x180] sm:$0xff]
    %v82 = vld [vmem:[#allocation2 + $0x188] sm:$0xff]
    %v83 = vld [vmem:[#allocation2 + $0x190] sm:$0xff]
    %v84 = vld [vmem:[#allocation2 + $0x198] sm:$0xff]
    %v85 = vld [vmem:[%s3] sm:$0xf]
    %v87 = vlaneseq
    %v88 = vshrl.u32 %v87, 7
    %v89 = vsub.s32 0, %v88
    %v90 = vrot.slane %v85, %v89
    %v91 = vlaneseq
    %v92 = vshrl.u32 %v91, 7
    %v93 = vsub.s32 1, %v92
    %v94 = vrot.slane %v85, %v93
    %v95 = vlaneseq
    %v96 = vshrl.u32 %v95, 7
    %v97 = vsub.s32 2, %v96
    %v98 = vrot.slane %v85, %v97
    %v99 = vlaneseq
    %v100 = vshrl.u32 %v99, 7
    %v101 = vsub.s32 3, %v100
    %v102 = vrot.slane %v85, %v101
    %v108 = vunpack.c.l.b16 %v32
    %v109 = vunpack.c.h.b16 %v32
    %v110 = vpack.c.b16 %v108, %v108
    %v111 = vpack.c.b16 %v109, %v109
    %v165 = vunpack.c.l.b16 %v33
    %v166 = vunpack.c.h.b16 %v33
    %v167 = vunpack.c.l.b16 %v34
    %v168 = vunpack.c.h.b16 %v34
    %v169 = vunpack.c.l.b16 %v35
    %v170 = vunpack.c.h.b16 %v35
    %v171 = vunpack.c.l.b16 %v36
    %v172 = vunpack.c.h.b16 %v36
    %v173 = vunpack.c.l.b16 %v37
    %v174 = vunpack.c.h.b16 %v37
    %v175 = vunpack.c.l.b16 %v38
    %v176 = vunpack.c.h.b16 %v38
    %v177 = vunpack.c.l.b16 %v39
    %v178 = vunpack.c.h.b16 %v39
    %v179 = vunpack.c.l.b16 %v40
    %v180 = vunpack.c.h.b16 %v40
    %v181 = vunpack.c.l.b16 %v41
    %v182 = vunpack.c.h.b16 %v41
    %v183 = vunpack.c.l.b16 %v42
    %v184 = vunpack.c.h.b16 %v42
    %v185 = vunpack.c.l.b16 %v43
    %v186 = vunpack.c.h.b16 %v43
    %v187 = vunpack.c.l.b16 %v44
    %v188 = vunpack.c.h.b16 %v44
    %v189 = vunpack.c.l.b16 %v45
    %v190 = vunpack.c.h.b16 %v45
    %v191 = vunpack.c.l.b16 %v46
    %v192 = vunpack.c.h.b16 %v46
    %v193 = vunpack.c.l.b16 %v47
    %v194 = vunpack.c.h.b16 %v47
    %v195 = vunpack.c.l.b16 %v48
    %v196 = vunpack.c.h.b16 %v48
    %v197 = vunpack.c.l.b16 %v49
    %v198 = vunpack.c.h.b16 %v49
    %v199 = vunpack.c.l.b16 %v50
    %v200 = vunpack.c.h.b16 %v50
    %v201 = vunpack.c.l.b16 %v51
    %v202 = vunpack.c.h.b16 %v51
    %v203 = vunpack.c.l.b16 %v52
    %v204 = vunpack.c.h.b16 %v52
    %v205 = vunpack.c.l.b16 %v53
    %v206 = vunpack.c.h.b16 %v53
    %v207 = vunpack.c.l.b16 %v54
    %v208 = vunpack.c.h.b16 %v54
    %v209 = vunpack.c.l.b16 %v55
    %v210 = vunpack.c.h.b16 %v55
    %v211 = vunpack.c.l.b16 %v56
    %v212 = vunpack.c.h.b16 %v56
    %v213 = vunpack.c.l.b16 %v57
    %v214 = vunpack.c.h.b16 %v57
    %v215 = vunpack.c.l.b16 %v58
    %v216 = vunpack.c.h.b16 %v58
    %v217 = vunpack.c.l.b16 %v59
    %v218 = vunpack.c.h.b16 %v59
    %v219 = vunpack.c.l.b16 %v60
    %v220 = vunpack.c.h.b16 %v60
    %v221 = vunpack.c.l.b16 %v61
    %v222 = vunpack.c.h.b16 %v61
    %v223 = vunpack.c.l.b16 %v62
    %v224 = vunpack.c.h.b16 %v62
    %v225 = vunpack.c.l.b16 %v63
    %v226 = vunpack.c.h.b16 %v63
    %v227 = vunpack.c.l.b16 %v64
    %v228 = vunpack.c.h.b16 %v64
    %v229 = vunpack.c.l.b16 %v65
    %v230 = vunpack.c.h.b16 %v65
    %v231 = vunpack.c.l.b16 %v66
    %v232 = vunpack.c.h.b16 %v66
    %v233 = vunpack.c.l.b16 %v67
    %v234 = vunpack.c.h.b16 %v67
    %v235 = vunpack.c.l.b16 %v68
    %v236 = vunpack.c.h.b16 %v68
    %v237 = vunpack.c.l.b16 %v69
    %v238 = vunpack.c.h.b16 %v69
    %v239 = vunpack.c.l.b16 %v70
    %v240 = vunpack.c.h.b16 %v70
    %v241 = vunpack.c.l.b16 %v71
    %v242 = vunpack.c.h.b16 %v71
    %v243 = vunpack.c.l.b16 %v72
    %v244 = vunpack.c.h.b16 %v72
    %v245 = vunpack.c.l.b16 %v73
    %v246 = vunpack.c.h.b16 %v73
    %v247 = vunpack.c.l.b16 %v74
    %v248 = vunpack.c.h.b16 %v74
    %v249 = vunpack.c.l.b16 %v75
    %v250 = vunpack.c.h.b16 %v75
    %v251 = vunpack.c.l.b16 %v76
    %v252 = vunpack.c.h.b16 %v76
    %v253 = vunpack.c.l.b16 %v77
    %v254 = vunpack.c.h.b16 %v77
    %v255 = vunpack.c.l.b16 %v78
    %v256 = vunpack.c.h.b16 %v78
    %v257 = vunpack.c.l.b16 %v79
    %v258 = vunpack.c.h.b16 %v79
    %v259 = vunpack.c.l.b16 %v80
    %v260 = vunpack.c.h.b16 %v80
    %v261 = vunpack.c.l.b16 %v81
    %v262 = vunpack.c.h.b16 %v81
    %v263 = vunpack.c.l.b16 %v82
    %v264 = vunpack.c.h.b16 %v82
    %v265 = vunpack.c.l.b16 %v83
    %v266 = vunpack.c.h.b16 %v83
    %v267 = vunpack.c.l.b16 %v84
    %v268 = vunpack.c.h.b16 %v84
    %v269 = vpack.c.b16 %v169, %v165
    %v270 = vpack.c.b16 %v170, %v166
    %v271 = vpack.c.b16 %v171, %v167
    %v272 = vpack.c.b16 %v172, %v168
    %v273 = vpack.c.b16 %v177, %v173
    %v274 = vpack.c.b16 %v178, %v174
    %v275 = vpack.c.b16 %v179, %v175
    %v276 = vpack.c.b16 %v180, %v176
    %v277 = vpack.c.b16 %v185, %v181
    %v278 = vpack.c.b16 %v186, %v182
    %v279 = vpack.c.b16 %v187, %v183
    %v280 = vpack.c.b16 %v188, %v184
    %v281 = vpack.c.b16 %v193, %v189
    %v282 = vpack.c.b16 %v194, %v190
    %v283 = vpack.c.b16 %v195, %v191
    %v284 = vpack.c.b16 %v196, %v192
    %v285 = vpack.c.b16 %v201, %v197
    %v286 = vpack.c.b16 %v202, %v198
    %v287 = vpack.c.b16 %v203, %v199
    %v288 = vpack.c.b16 %v204, %v200
    %v289 = vpack.c.b16 %v209, %v205
    %v290 = vpack.c.b16 %v210, %v206
    %v291 = vpack.c.b16 %v211, %v207
    %v292 = vpack.c.b16 %v212, %v208
    %v293 = vpack.c.b16 %v217, %v213
    %v294 = vpack.c.b16 %v218, %v214
    %v295 = vpack.c.b16 %v219, %v215
    %v296 = vpack.c.b16 %v220, %v216
    %v297 = vpack.c.b16 %v225, %v221
    %v298 = vpack.c.b16 %v226, %v222
    %v299 = vpack.c.b16 %v227, %v223
    %v300 = vpack.c.b16 %v228, %v224
    %v301 = vpack.c.b16 %v233, %v229
    %v302 = vpack.c.b16 %v234, %v230
    %v303 = vpack.c.b16 %v235, %v231
    %v304 = vpack.c.b16 %v236, %v232
    %v305 = vpack.c.b16 %v241, %v237
    %v306 = vpack.c.b16 %v242, %v238
    %v307 = vpack.c.b16 %v243, %v239
    %v308 = vpack.c.b16 %v244, %v240
    %v309 = vpack.c.b16 %v249, %v245
    %v310 = vpack.c.b16 %v250, %v246
    %v311 = vpack.c.b16 %v251, %v247
    %v312 = vpack.c.b16 %v252, %v248
    %v313 = vpack.c.b16 %v257, %v253
    %v314 = vpack.c.b16 %v258, %v254
    %v315 = vpack.c.b16 %v259, %v255
    %v316 = vpack.c.b16 %v260, %v256
    %v317 = vpack.c.b16 %v265, %v261
    %v318 = vpack.c.b16 %v266, %v262
    %v319 = vpack.c.b16 %v267, %v263
    %v320 = vpack.c.b16 %v268, %v264
    %vm373 = vcmask 654336
    %v375 = vsel %vm373, %v111, 0
    %377 = vmatprep.subr.bf16.mxu0 %v298
    %378 = vmatpush1.bf16.msra.mxu0 %v297
    %379 = vmatprep.subr.bf16.mxu0 %v294
    %380 = vmatpush1.bf16.msra.mxu0 %v293
    %381 = vmatprep.subr.bf16.mxu0 %v290
    %382 = vmatpush1.bf16.msra.mxu0 %v289
    %383 = vmatprep.subr.bf16.mxu0 %v286
    %384 = vmatpush1.bf16.msra.mxu0 %v285
    %385 = vmatprep.subr.bf16.mxu0 %v282
    %386 = vmatpush1.bf16.msra.mxu0 %v281
    %387 = vmatprep.subr.bf16.mxu0 %v278
    %388 = vmatpush1.bf16.msra.mxu0 %v277
    %389 = vmatprep.subr.bf16.mxu0 %v274
    %390 = vmatpush1.bf16.msra.mxu0 %v273
    %391 = vmatprep.subr.bf16.mxu0 %v270
    %392 = vmatpush1.bf16.msra.mxu0 %v269
    %393 = vmatprep.subr.bf16.mxu0 0
    %394 = vmatpush2.bf16.msra.mxu0 0
    %395 = vmatprep.subr.bf16.mxu0 0
    %396 = vmatpush2.bf16.msra.mxu0 0
    %397 = vmatprep.subr.bf16.mxu0 0
    %398 = vmatpush2.bf16.msra.mxu0 0
    %399 = vmatprep.subr.bf16.mxu0 %v318
    %400 = vmatpush2.bf16.msra.mxu0 %v317
    %401 = vmatprep.subr.bf16.mxu0 %v314
    %402 = vmatpush2.bf16.msra.mxu0 %v313
    %403 = vmatprep.subr.bf16.mxu0 %v310
    %404 = vmatpush2.bf16.msra.mxu0 %v309
    %405 = vmatprep.subr.bf16.mxu0 %v306
    %406 = vmatpush2.bf16.msra.mxu0 %v305
    %407 = vmatprep.subr.bf16.mxu0 %v302
    %408 = vmatpush2.bf16.msra.mxu0 %v301
    %409 = vmatprep.mubr.bf16.mxu0 %v375
    %410 = vmatmul.mubr.bf16.gmra.mxu0 %v110
    %v411 = vpop.f32.mrf.mxu0
    %v412 = vadd.f32 %v90, %v411
    %v413 = vpop.f32.mrf.mxu0
    %v414 = vadd.f32 %v94, %v413
    %v415 = vpop.f32.mrf.mxu0
    %v416 = vpop.f32.mrf.mxu0
    %417 = vdwg.mxu0
    %418 = vmatprep.subr.bf16.mxu0 %v300
    %419 = vmatpush1.bf16.msra.mxu0 %v299
    %420 = vmatprep.subr.bf16.mxu0 %v296
    %421 = vmatpush1.bf16.msra.mxu0 %v295
    %422 = vmatprep.subr.bf16.mxu0 %v292
    %423 = vmatpush1.bf16.msra.mxu0 %v291
    %424 = vmatprep.subr.bf16.mxu0 %v288
    %425 = vmatpush1.bf16.msra.mxu0 %v287
    %426 = vmatprep.subr.bf16.mxu0 %v284
    %427 = vmatpush1.bf16.msra.mxu0 %v283
    %428 = vmatprep.subr.bf16.mxu0 %v280
    %429 = vmatpush1.bf16.msra.mxu0 %v279
    %430 = vmatprep.subr.bf16.mxu0 %v276
    %431 = vmatpush1.bf16.msra.mxu0 %v275
    %432 = vmatprep.subr.bf16.mxu0 %v272
    %433 = vmatpush1.bf16.msra.mxu0 %v271
    %434 = vmatprep.subr.bf16.mxu0 0
    %435 = vmatpush2.bf16.msra.mxu0 0
    %436 = vmatprep.subr.bf16.mxu0 0
    %437 = vmatpush2.bf16.msra.mxu0 0
    %438 = vmatprep.subr.bf16.mxu0 0
    %439 = vmatpush2.bf16.msra.mxu0 0
    %440 = vmatprep.subr.bf16.mxu0 %v320
    %441 = vmatpush2.bf16.msra.mxu0 %v319
    %442 = vmatprep.subr.bf16.mxu0 %v316
    %443 = vmatpush2.bf16.msra.mxu0 %v315
    %444 = vmatprep.subr.bf16.mxu0 %v312
    %445 = vmatpush2.bf16.msra.mxu0 %v311
    %446 = vmatprep.subr.bf16.mxu0 %v308
    %447 = vmatpush2.bf16.msra.mxu0 %v307
    %448 = vmatprep.subr.bf16.mxu0 %v304
    %449 = vmatpush2.bf16.msra.mxu0 %v303
    %450 = vmatprep.mubr.bf16.mxu0 %v375
    %451 = vmatmul.mubr.bf16.gmra.mxu0 %v110
    %v452 = vpop.f32.mrf.mxu0
    %v453 = vadd.f32 %v98, %v452
    %v454 = vpop.f32.mrf.mxu0
    %v455 = vadd.f32 %v102, %v454
    %v456 = vpop.f32.mrf.mxu0
    %v457 = vpop.f32.mrf.mxu0
    %458 = vdwg.mxu0
    %v459 = vld [vmem:[%s1] sm:$0xff]
    %v460 = vxor.u32 %v412, 2147483648
    %v461 = vmul.f32 %v460, 1.442695
    %v462 = vpow.pop %v461
    %v463 = vadd.f32 %v462, 1.0
    %v464 = vrcp.pop %v463
    %v465 = vmul.f32 1.0, %v464
    %467 = vrot.lane.b32.xlu0 %v412, 32
    %v468 = vpop.permute.xlu0 %467
    %v470 = vmul.f32 %v465, %v468
    %472 = vrot.lane.b32.xlu0 %v470, 64
    %v473 = vpop.permute.xlu0 %472
    %v475 = vadd.f32 %v412, %v473
    %v476 = vtanh.pop %v475
    %478 = vrot.lane.b32.xlu0 %v476, 64
    %v479 = vpop.permute.xlu0 %478
    %v481 = vsub.f32 %v459, %v479
    %483 = vrot.lane.b32.xlu0 %v481, 32
    %v484 = vpop.permute.xlu0 %483
    %v486 = vmul.f32 %v465, %v484
    %488 = vrot.lane.b32.xlu0 %v486, 32
    %v489 = vpop.permute.xlu0 %488
    %v491 = vadd.f32 %v476, %v489
    %v492 = vxor.u32 %v414, 2147483648
    %v493 = vmul.f32 %v492, 1.442695
    %v494 = vpow.pop %v493
    %v495 = vadd.f32 %v494, 1.0
    %v496 = vrcp.pop %v495
    %v497 = vmul.f32 1.0, %v496
    %499 = vrot.lane.b32.xlu0 %v414, 32
    %v500 = vpop.permute.xlu0 %499
    %v502 = vmul.f32 %v497, %v500
    %504 = vrot.lane.b32.xlu0 %v502, 64
    %v505 = vpop.permute.xlu0 %504
    %v507 = vadd.f32 %v414, %v505
    %v508 = vtanh.pop %v507
    %510 = vrot.lane.b32.xlu0 %v508, 96
    %v511 = vpop.permute.xlu0 %510
    %v513 = vsub.f32 %v459, %v511
    %v514 = vmul.f32 %v497, %v513
    %516 = vrot.lane.b32.xlu0 %v514, 32
    %v517 = vpop.permute.xlu0 %516
    %v519 = vadd.f32 %v508, %v517
    %v520 = vxor.u32 %v453, 2147483648
    %v521 = vmul.f32 %v520, 1.442695
    %v522 = vpow.pop %v521
    %v523 = vadd.f32 %v522, 1.0
    %v524 = vrcp.pop %v523
    %v525 = vmul.f32 1.0, %v524
    %527 = vrot.lane.b32.xlu0 %v453, 32
    %v528 = vpop.permute.xlu0 %527
    %v530 = vmul.f32 %v525, %v528
    %532 = vrot.lane.b32.xlu0 %v530, 64
    %v533 = vpop.permute.xlu0 %532
    %v535 = vadd.f32 %v453, %v533
    %v536 = vtanh.pop %v535
    %v537 = vsub.f32 %v459, %v536
    %539 = vrot.lane.b32.xlu0 %v537, 96
    %v540 = vpop.permute.xlu0 %539
    %v542 = vmul.f32 %v525, %v540
    %544 = vrot.lane.b32.xlu0 %v542, 32
    %v545 = vpop.permute.xlu0 %544
    %v547 = vadd.f32 %v536, %v545
    %v548 = vxor.u32 %v455, 2147483648
    %v549 = vmul.f32 %v548, 1.442695
    %v550 = vpow.pop %v549
    %v551 = vadd.f32 %v550, 1.0
    %v552 = vrcp.pop %v551
    %v553 = vmul.f32 1.0, %v552
    %555 = vrot.lane.b32.xlu0 %v455, 32
    %v556 = vpop.permute.xlu0 %555
    %v558 = vmul.f32 %v553, %v556
    %560 = vrot.lane.b32.xlu0 %v558, 64
    %v561 = vpop.permute.xlu0 %560
    %v563 = vadd.f32 %v455, %v561
    %v564 = vtanh.pop %v563
    %566 = vrot.lane.b32.xlu0 %v564, 32
    %v567 = vpop.permute.xlu0 %566
    %v569 = vsub.f32 %v459, %v567
    %571 = vrot.lane.b32.xlu0 %v569, 64
    %v572 = vpop.permute.xlu0 %571
    %v574 = vmul.f32 %v553, %v572
    %576 = vrot.lane.b32.xlu0 %v574, 32
    %v577 = vpop.permute.xlu0 %576
    %v579 = vadd.f32 %v564, %v577
    %581 = vrot.lane.b32.xlu0 %v491, 64
    %v582 = vpop.permute.xlu0 %581
    %585 = vrot.lane.b32.xlu0 %v519, 96
    %v586 = vpop.permute.xlu0 %585
    %589 = vrot.lane.b32.xlu0 %v579, 32
    %v590 = vpop.permute.xlu0 %589
    %vm592 = vcmask 261120
    %v593 = vsel %vm592, %v582, %v586
    %vm594 = vcmask 523264
    %v595 = vsel %vm594, %v593, %v547
    %vm596 = vcmask 785408
    %v597 = vsel %vm596, %v595, %v590
    %598 = vst [vmem:[%s4] sm:$0xff] %v597
    // Predicated region
    $region22: #{gru_agg_forward.1} parent=1 // pred_check
      _
    $region23: #{gru_agg_forward.1} parent=1 // pred_check_branch
      %600 = sbr.rel (0) target = $region25
    $region24: #{gru_agg_forward.1} parent=1 // pred_region
      _
    $region25: #{gru_agg_forward.1} parent=1 // pred_fallthru
      _
    // Predicated region
    $region26: #{gru_agg_forward.1} parent=1 // pred_check
      _
    $region27: #{gru_agg_forward.1} parent=1 // pred_check_branch
      %602 = sbr.rel (0) target = $region29
    $region28: #{gru_agg_forward.1} parent=1 // pred_region
      _
    $region29: #{gru_agg_forward.1} parent=1 // pred_fallthru
      _
    %603 = vsyncpa [#allocation3], 1

</llo_original>
